<compile_context>
chip_gen: v5e
topology: v5e:2x2
jax: 0.10.0
libtpu: 0.0.40
codegen_flags: <defaults>
</compile_context>

<pallas_src>
import functools

import jax
import jax.numpy as jnp
from jax.experimental import pallas as pl
from jax.experimental.pallas import tpu as pltpu


_LANE = 128
# Below this many bytes, launch + 3 DMAs dominate: let XLA fuse concat+relu+reshape.
_PALLAS_MIN_BYTES = 4 << 20
# Target live VMEM (inputs + output, double-buffered).  Fits v5e's 16 MiB scoped
# default and leaves ample headroom on v6e (32 MiB default) / v7x (64 MiB physical).
_VMEM_LIVE_BUDGET = 12 << 20


def _round_up(n, m):
    return ((n + m - 1) // m) * m


def _sublane_pack(dtype):
    # Packed-sublane row multiple: 8 for 4-byte, 16 for 2-byte, 32 for 1-byte dtypes.
    return max(8, 32 // jnp.dtype(dtype).itemsize)


def _concat_relu_kernel(x_ref, y_ref, o_ref, *, seam):
    """Two lane-aligned slice stores; one ReLU each; no concat temporary."""
    zero = jnp.zeros((), dtype=o_ref.dtype)
    o_ref[:, :seam] = jnp.maximum(x_ref[...], zero)
    o_ref[:, seam:] = jnp.maximum(y_ref[...], zero)


def model_a_forward(x, y, *, force_pallas=False, max_rows_per_block=None):
    """Pallas/JAX implementation of ModelA.forward: cat(dim=1) -> relu -> view(-1)."""
    B, Cx, W = x.shape
    By, Cy, Wy_in = y.shape
    assert B == By and W == Wy_in, "x and y must agree on batch and trailing dims"
    assert x.dtype == y.dtype, (
        "x and y must share a dtype (torch.cat promotion not supported here)"
    )

    itemsize = jnp.dtype(x.dtype).itemsize
    total_bytes = B * (Cx + Cy) * W * itemsize

    if not force_pallas and total_bytes < _PALLAS_MIN_BYTES:
        # Tiny/mid workload fast path: XLA fuses everything into one cheap kernel.
        z = jnp.maximum(jnp.concatenate((x, y), axis=1), jnp.zeros((), x.dtype))
        return z.reshape(-1)

    # Lane-major 2D layout: row b of the output is [x[b].ravel(), y[b].ravel()],
    # exactly the flattened order of cat((x, y), dim=1)[b].
    Wx, Wy = Cx * W, Cy * W
    Wx_p, Wy_p = _round_up(Wx, _LANE), _round_up(Wy, _LANE)
    width_p = Wx_p + Wy_p
    padded = (Wx_p != Wx) or (Wy_p != Wy)

    x2d = x.reshape(B, Wx)
    y2d = y.reshape(B, Wy)
    if Wx_p != Wx:
        x2d = jnp.pad(x2d, ((0, 0), (0, Wx_p - Wx)))
    if Wy_p != Wy:
        y2d = jnp.pad(y2d, ((0, 0), (0, Wy_p - Wy)))

    # Row-tile selection: multiple of the sublane pack, sized so that
    # (x_tile + y_tile + out_tile) * 2 double-buffers stays within budget.
    pack = _sublane_pack(x.dtype)
    per_row_bytes = 2 * width_p * itemsize            # input bytes + output bytes per row
    tr = _VMEM_LIVE_BUDGET // (2 * per_row_bytes)     # 2 = double buffering
    tr = max(pack, (tr // pack) * pack)
    if max_rows_per_block is not None:
        tr = min(tr, max(pack, (max_rows_per_block // pack) * pack))
    if tr >= B:
        tr = B                                        # full-extent row block is always legal
    grid = (pl.cdiv(B, tr),)

    live_bytes = 2 * 2 * tr * width_p * itemsize      # (in + out) x double-buffer
    vmem_limit = max(32 << 20, int(live_bytes * 1.25))
    # TODO(synk): also tile the lane axis if a single pack-row stripe ever exceeds
    # ~half of v7x's 64 MiB physical VMEM (extremely wide Cx*W / Cy*W).

    kernel = functools.partial(_concat_relu_kernel, seam=Wx_p)
    cat_relu = pl.pallas_call(
        kernel,
        out_shape=jax.ShapeDtypeStruct((B, width_p), x.dtype),
        grid=grid,
        in_specs=[
            pl.BlockSpec((tr, Wx_p), lambda i: (i, 0),
                         memory_space=pltpu.MemorySpace.VMEM),
            pl.BlockSpec((tr, Wy_p), lambda i: (i, 0),
                         memory_space=pltpu.MemorySpace.VMEM),
        ],
        out_specs=pl.BlockSpec((tr, width_p), lambda i: (i, 0),
                               memory_space=pltpu.MemorySpace.VMEM),
        compiler_params=pltpu.CompilerParams(
            dimension_semantics=("parallel",),
            vmem_limit_bytes=vmem_limit,
        ),
        cost_estimate=pl.CostEstimate(
            flops=B * width_p,
            transcendentals=0,
            bytes_accessed=2 * B * width_p * itemsize,
        ),
    )
    out2d = cat_relu(x2d, y2d)

    # relu(relu(x)) == relu(x): the second ReLU is dropped; only the flatten remains.
    if padded:
        # Seam was not naturally 128-aligned: drop the pad columns, then flatten.
        out = jnp.concatenate([out2d[:, :Wx], out2d[:, Wx_p:Wx_p + Wy]], axis=1)
        return out.reshape(-1)
    # Aligned case: flatten is a pure metadata reshape.
    return out2d.reshape(-1)


def _reference(x, y):
    z = jnp.maximum(jnp.concatenate((x, y), axis=1), 0.0).reshape(-1)
    return jnp.maximum(z, 0.0).reshape(-1)


if __name__ == "__main__":
    key = jax.random.PRNGKey(0)
    kx, ky, ka, kb = jax.random.split(key, 4)

    # --- Original spec shapes (2, 3, 4): seam needs padding; exercise Pallas path. ---
    x = jax.random.normal(kx, (2, 3, 4), dtype=jnp.float32)
    y = jax.random.normal(ky, (2, 3, 4), dtype=jnp.float32)

    out_pallas = jax.block_until_ready(model_a_forward(x, y, force_pallas=True))
    out_default = jax.block_until_ready(model_a_forward(x, y))
    ref = _reference(x, y)

    assert out_pallas.shape == (2 * 6 * 4,)
    assert jnp.allclose(out_pallas, ref), "pallas (padded-seam) path mismatch vs reference"
    assert jnp.allclose(out_default, ref), "default XLA path mismatch vs reference"

    # --- Lane-aligned widths + multi-block row grid (no padding, free flatten). ---
    xa = jax.random.normal(ka, (16, 2, 128), dtype=jnp.float32)   # Wx = 256
    ya = jax.random.normal(kb, (16, 6, 128), dtype=jnp.float32)   # Wy = 768
    out_tiled = jax.block_until_ready(
        model_a_forward(xa, ya, force_pallas=True, max_rows_per_block=8))
    ref_tiled = _reference(xa, ya)
    assert out_tiled.shape == ref_tiled.shape
    assert jnp.allclose(out_tiled, ref_tiled), "pallas (tiled, aligned) path mismatch vs reference"

    print("KERNEL_OK")
</pallas_src>

<mosaic_0001>
module attributes {stable_mosaic.version = 11 : i64} {
  func.func @_concat_relu_kernel(%arg0: i32, %arg1: memref<2x128xf32, #tpu.memory_space<vmem>>, %arg2: memref<2x128xf32, #tpu.memory_space<vmem>>, %arg3: memref<2x256xf32, #tpu.memory_space<vmem>>) attributes {dimension_semantics = [#tpu.dimension_semantics<parallel>], iteration_bounds = array<i64: 1>, scalar_prefetch = 0 : i64, scratch_operands = 0 : i64, tpu.core_type = #tpu.core_type<tc>, window_params = [{transform_indices = @transform_0, window_bounds = array<i64: 2, 128>}, {transform_indices = @transform_1, window_bounds = array<i64: 2, 128>}, {transform_indices = @transform_2, window_bounds = array<i64: 2, 256>}]} {
    %c0 = arith.constant 0 : index
    %c0_0 = arith.constant 0 : index
    %0 = vector.load %arg1[%c0, %c0_0] : memref<2x128xf32, #tpu.memory_space<vmem>>, vector<2x128xf32>
    %cst = arith.constant 0.000000e+00 : f32
    %1 = vector.broadcast %cst : f32 to vector<2x128xf32>
    %2 = arith.maximumf %0, %1 : vector<2x128xf32>
    %c0_1 = arith.constant 0 : index
    %c0_2 = arith.constant 0 : index
    %3 = vector.load %arg3[%c0_1, %c0_2] : memref<2x256xf32, #tpu.memory_space<vmem>>, vector<2x128xf32>
    tpu.vector_store %arg3[%c0_1, %c0_2], %2 {strides = array<i32>} : memref<2x256xf32, #tpu.memory_space<vmem>>, vector<2x128xf32>,
    %c0_3 = arith.constant 0 : index
    %c0_4 = arith.constant 0 : index
    %4 = vector.load %arg2[%c0_3, %c0_4] : memref<2x128xf32, #tpu.memory_space<vmem>>, vector<2x128xf32>
    %cst_5 = arith.constant 0.000000e+00 : f32
    %5 = vector.broadcast %cst_5 : f32 to vector<2x128xf32>
    %6 = arith.maximumf %4, %5 : vector<2x128xf32>
    %c0_6 = arith.constant 0 : index
    %c128 = arith.constant 128 : index
    %7 = vector.load %arg3[%c0_6, %c128] : memref<2x256xf32, #tpu.memory_space<vmem>>, vector<2x128xf32>
    tpu.vector_store %arg3[%c0_6, %c128], %6 {strides = array<i32>} : memref<2x256xf32, #tpu.memory_space<vmem>>, vector<2x128xf32>,
    return
  }
  func.func @transform_0(%arg0: i32) -> (i32, i32) {
    %c0_i32 = arith.constant 0 : i32
    %c0_i32_0 = arith.constant 0 : i32
    return %arg0, %c0_i32 : i32, i32
  }
  func.func @transform_1(%arg0: i32) -> (i32, i32) {
    %c0_i32 = arith.constant 0 : i32
    %c0_i32_0 = arith.constant 0 : i32
    return %arg0, %c0_i32 : i32, i32
  }
  func.func @transform_2(%arg0: i32) -> (i32, i32) {
    %c0_i32 = arith.constant 0 : i32
    %c0_i32_0 = arith.constant 0 : i32
    return %arg0, %c0_i32 : i32, i32
  }
}

</mosaic_0001>

<llo_original>
// kernel: tpu_custom_call.1
$region0: #{tpu_custom_call.1}
  #allocation0 [shape = 'u32[]', space=smem, size = 0x4, offset = 0x4, fixed_abs, tag = 'smem constant byte address 0x4 - core index']
  #allocation1 [shape = 'u32[72,128]{1,0:T(1,128)}', space=vmem, size = 0x9000, scoped, tag = 'internal scratch']
  %s0 = inlined_call_operand.hbm [shape: f32[2,128], index: 0, kind: input, shape index: {}]
  %s1 = inlined_call_operand.hbm [shape: f32[2,128], index: 1, kind: input, shape index: {}]
  %s2 = inlined_call_operand.hbm [shape: f32[2,256], index: 2, kind: output, shape index: {}]
  %s3 = sld [smem:[#allocation0]]
  $region26: #{tpu_custom_call.1} parent=0
    _
  %s5 = ssub.s32 1, %s3
  %s6 = scalar_select 0, %s5, %s3
  $region1: #{tpu_custom_call.1} parent=0
    #allocation2 [shape = 'u8[1024]{0}', space=vmem, size = 0x400, scoped, tag = 'input window, operand 0, single buffered']
    #allocation3 [shape = 's32[1]{0}', space=sflag, size = 0x4, scoped, tag = 'scoped memory for tpu_custom_call.1']
    #allocation4 [shape = 's32[1]{0}', space=sflag, size = 0x4, scoped, tag = 'scoped memory for tpu_custom_call.1']
    #allocation5 [shape = 'u8[1024]{0}', space=vmem, size = 0x400, scoped, tag = 'input window, operand 1, single buffered']
    #allocation6 [shape = 's32[1]{0}', space=sflag, size = 0x4, scoped, tag = 'scoped memory for tpu_custom_call.1']
    #allocation7 [shape = 'u8[2048]{0}', space=vmem, size = 0x800, scoped, tag = 'output window, operand 0, single buffered']
    %7 = vsyncpa [#allocation3], 0
    %8 = vsyncpa [#allocation6], 0
    %9 = vsyncpa [#allocation4], 0
    // Predicated region
    $region2: #{tpu_custom_call.1} parent=1 // pred_check
      _
    $region3: #{tpu_custom_call.1} parent=1 // pred_check_branch
      %11 = sbr.rel (0) target = $region5
    $region4: #{tpu_custom_call.1} parent=1 // pred_region
      %13 = vsyncadd [#allocation3], 0
      %s15 = sshll.u32 %s0, 4
      %s16 = int_to_ptr.hbm [resolvable:$true] %s15
      %s17 = sshll.u32 [#allocation2], 4
      %s18 = int_to_ptr.vmem [resolvable:$true] %s17
      %20 = dma.hbm_to_vmem [thread:$0]  %s16, 32, %s18, [#allocation3]
    $region5: #{tpu_custom_call.1} parent=1 // pred_fallthru
      _
    // Predicated region
    $region6: #{tpu_custom_call.1} parent=1 // pred_check
      _
    $region7: #{tpu_custom_call.1} parent=1 // pred_check_branch
      %22 = sbr.rel (0) target = $region9
    $region8: #{tpu_custom_call.1} parent=1 // pred_region
      %24 = vsyncadd [#allocation6], 0
      %s26 = sshll.u32 %s1, 4
      %s27 = int_to_ptr.hbm [resolvable:$true] %s26
      %s28 = sshll.u32 [#allocation5], 4
      %s29 = int_to_ptr.vmem [resolvable:$true] %s28
      %31 = dma.hbm_to_vmem [thread:$0]  %s27, 32, %s29, [#allocation6]
    $region9: #{tpu_custom_call.1} parent=1 // pred_fallthru
      _
    // Predicated region
    $region10: #{tpu_custom_call.1} parent=1 // pred_check
      _
    $region11: #{tpu_custom_call.1} parent=1 // pred_check_branch
      %33 = sbr.rel (0) target = $region13
    $region12: #{tpu_custom_call.1} parent=1 // pred_region
      %35 = dma.done [#allocation3], 32
    $region13: #{tpu_custom_call.1} parent=1 // pred_fallthru
      _
    // Predicated region
    $region14: #{tpu_custom_call.1} parent=1 // pred_check
      _
    $region15: #{tpu_custom_call.1} parent=1 // pred_check_branch
      %37 = sbr.rel (0) target = $region17
    $region16: #{tpu_custom_call.1} parent=1 // pred_region
      %39 = dma.done [#allocation6], 32
    $region17: #{tpu_custom_call.1} parent=1 // pred_fallthru
      _
    %v40 = vld [vmem:[#allocation2] sm:$0x3]
    %v41 = vmax.f32 %v40, 0.0
    %42 = vst [vmem:[#allocation7] sm:$0x3] %v41
    %v43 = vld [vmem:[#allocation5] sm:$0x3]
    %v44 = vmax.f32 %v43, 0.0
    %45 = vst [vmem:[#allocation7 + $0x2] sm:$0x3] %v44
    // Predicated region
    $region18: #{tpu_custom_call.1} parent=1 // pred_check
      _
    $region19: #{tpu_custom_call.1} parent=1 // pred_check_branch
      %47 = sbr.rel (0) target = $region21
    $region20: #{tpu_custom_call.1} parent=1 // pred_region
      %49 = vsyncadd [#allocation4], 0
      %s51 = sshll.u32 [#allocation7], 4
      %s52 = int_to_ptr.vmem [resolvable:$true] %s51
      %s53 = sshll.u32 %s2, 4
      %s54 = int_to_ptr.hbm [resolvable:$true] %s53
      %56 = dma.vmem_to_hbm [thread:$0]  %s52, 64, %s54, [#allocation4]
    $region21: #{tpu_custom_call.1} parent=1 // pred_fallthru
      _
    // Predicated region
    $region22: #{tpu_custom_call.1} parent=1 // pred_check
      _
    $region23: #{tpu_custom_call.1} parent=1 // pred_check_branch
      %58 = sbr.rel (0) target = $region25
    $region24: #{tpu_custom_call.1} parent=1 // pred_region
      %60 = dma.done [#allocation4], 64
    $region25: #{tpu_custom_call.1} parent=1 // pred_fallthru
      _
    %61 = vsyncpa [#allocation3], 1
    %62 = vsyncpa [#allocation6], 1
    %63 = vsyncpa [#allocation4], 1

</llo_original>
